<compile_context>
chip_gen: v7x
topology: tpu7x:2x2x1
jax: 0.10.0
libtpu: 0.0.40
codegen_flags: <defaults>
</compile_context>

<pallas_src>
import functools

import jax
import jax.numpy as jnp
from jax.experimental import pallas as pl
from jax.experimental.pallas import tpu as pltpu

LANES = 128
TARGET_TILE_BYTES = 2 * 1024 * 1024      # ~2 MiB per input tile per stream
ACC_ROWS_WIDE = 32                        # widened resident accumulator rows


def _tensorcores_per_chip():
    """Best-effort detection of TensorCores per chip (v7x has 2, others 1)."""
    try:
        info = pltpu.get_tpu_info()
        for name in ("tensorcores_per_chip", "num_tensorcores",
                     "num_cores_per_chip", "core_count", "num_cores"):
            v = getattr(info, name, None)
            if isinstance(v, int) and 1 <= v <= 8:
                return min(v, 2)
    except Exception:
        pass
    try:
        kind = jax.devices()[0].device_kind.lower()
        if "v7" in kind:
            return 2
    except Exception:
        pass
    return 1


def _choose_tile_rows(rows, dtype):
    """Dtype-aware tile height targeting ~TARGET_TILE_BYTES per input stream."""
    itemsize = jnp.dtype(dtype).itemsize
    target = max(TARGET_TILE_BYTES // (LANES * itemsize), 8)
    target = max((target // ACC_ROWS_WIDE) * ACC_ROWS_WIDE, 8)
    if rows >= 8:
        return max(8, min(target, (rows // 8) * 8))
    return rows


def _split_lane_slab(a):
    """(slab, tail): no-copy (rows,128) view of the 128-aligned prefix + the
    <128-element ragged tail (or None).  Aligned inputs take the zero-copy
    path; only genuinely ragged inputs pay for a (cheaper-than-pad) slice."""
    flat = a.reshape(-1)
    n = flat.size
    rows = n // LANES
    n_aligned = rows * LANES
    if rows == 0:
        return None, flat
    if n_aligned == n:
        return flat.reshape(rows, LANES), None
    slab = jax.lax.slice(flat, (0,), (n_aligned,)).reshape(rows, LANES)
    tail = jax.lax.slice(flat, (n_aligned,), (n,))
    return slab, tail


def _wmae_kernel(*refs, tile_rows, rows, steps_per_shard, total_blocks,
                 acc_rows, has_weight, need_mask, ragged):
    if has_weight:
        x_ref, y_ref, w_ref, o_ref = refs
    else:
        x_ref, y_ref, o_ref = refs
        w_ref = None

    s = pl.program_id(0)
    k = pl.program_id(1)

    # The (1, acc_rows, 128) output block (one per shard) is resident across
    # the reduction axis k, so it doubles as the accumulator.
    @pl.when(k == 0)
    def _():
        o_ref[...] = jnp.zeros_like(o_ref)

    x = x_ref[...].astype(jnp.float32)
    y = y_ref[...].astype(jnp.float32)
    contrib = jnp.abs(x - y)
    if has_weight:
        contrib = contrib * w_ref[...].astype(jnp.float32)

    def accumulate(c):
        # Collapse the tile onto an (acc_rows, 128) slab: acc_rows=32 gives 4
        # independent vreg add chains (ILP on the 4 VALU slots); the expensive
        # cross-lane reduction to a scalar happens once, outside the kernel.
        part = c.reshape(-1, acc_rows, LANES).sum(axis=0)
        o_ref[...] += part[None, :, :]

    if not need_mask:
        accumulate(contrib)
    else:
        # Only the ragged last block and phantom blocks pay for the mask.
        blk = s * steps_per_shard + k           # un-clamped logical block id
        edge = blk >= total_blocks              # phantom block
        if ragged:
            edge = jnp.logical_or(edge, blk == total_blocks - 1)

        @pl.when(jnp.logical_not(edge))
        def _():
            accumulate(contrib)

        @pl.when(edge)
        def _():
            row0 = blk * tile_rows
            row_ids = row0 + jax.lax.broadcasted_iota(jnp.int32, contrib.shape, 0)
            accumulate(jnp.where(row_ids < rows, contrib, 0.0))


def _partial_sums_call(x2, y2, w2, tile_rows, num_shards, semantics):
    rows = x2.shape[0]
    has_weight = w2 is not None

    total_blocks = -(-rows // tile_rows)
    steps = -(-total_blocks // num_shards)
    phantom = num_shards * steps != total_blocks   # some (s,k) map past the end
    ragged = rows % tile_rows != 0                 # last real block is partial
    need_mask = phantom or ragged

    if tile_rows % ACC_ROWS_WIDE == 0:
        acc_rows = ACC_ROWS_WIDE
    elif tile_rows % 8 == 0:
        acc_rows = 8
    else:
        acc_rows = tile_rows

    if phantom:
        def in_index(s, k):
            # Clamp phantom block ids so the DMA stays in bounds; the kernel's
            # row mask zeroes their contribution.
            return (jnp.minimum(s * steps + k, total_blocks - 1), 0)
    else:
        def in_index(s, k):
            return (s * steps + k, 0)

    tile_spec = pl.BlockSpec((tile_rows, LANES), in_index)
    in_specs = [tile_spec, tile_spec] + ([tile_spec] if has_weight else [])
    out_spec = pl.BlockSpec((1, acc_rows, LANES), lambda s, k: (s, 0, 0))

    kernel = functools.partial(
        _wmae_kernel,
        tile_rows=tile_rows, rows=rows, steps_per_shard=steps,
        total_blocks=total_blocks, acc_rows=acc_rows,
        has_weight=has_weight, need_mask=need_mask, ragged=ragged)

    # Explicit scoped-VMEM budget: inputs (double-buffered) + f32 temporaries.
    itemsizes = [x2.dtype.itemsize, y2.dtype.itemsize]
    if has_weight:
        itemsizes.append(w2.dtype.itemsize)
    tile_elems = tile_rows * LANES
    stream_bytes = sum(2 * tile_elems * sz for sz in itemsizes)
    scratch_bytes = 6 * tile_elems * 4
    vmem_limit = int(min(max(stream_bytes + scratch_bytes + (4 << 20), 32 << 20),
                         48 << 20))

    bytes_accessed = (sum(rows * LANES * sz for sz in itemsizes)
                      + num_shards * acc_rows * LANES * 4)
    flops = (3 + int(has_weight)) * rows * LANES

    operands = (x2, y2, w2) if has_weight else (x2, y2)
    return pl.pallas_call(
        kernel,
        out_shape=jax.ShapeDtypeStruct((num_shards, acc_rows, LANES), jnp.float32),
        grid_spec=pltpu.PrefetchScalarGridSpec(
            num_scalar_prefetch=0,
            grid=(num_shards, steps),
            in_specs=in_specs,
            out_specs=out_spec,
        ),
        compiler_params=pltpu.CompilerParams(
            dimension_semantics=semantics,
            vmem_limit_bytes=vmem_limit),
        cost_estimate=pl.CostEstimate(
            flops=int(flops), transcendentals=0,
            bytes_accessed=int(bytes_accessed)),
    )(*operands)


def _partial_sums(x2, y2, w2, tile_rows):
    rows = x2.shape[0]
    total_blocks = -(-rows // tile_rows)
    cores = _tensorcores_per_chip()
    num_shards = cores if (cores > 1 and total_blocks >= cores) else 1

    if num_shards > 1:
        # Multi-TensorCore chips (v7x): shard the leading grid axis across
        # cores with CORE_PARALLEL so both TCs (and DMA paths) stream.
        try:
            return _partial_sums_call(
                x2, y2, w2, tile_rows, num_shards,
                (pltpu.CORE_PARALLEL, pltpu.ARBITRARY))
        except Exception:
            pass  # fall back to the single-core serial grid below

    # Single-TensorCore chips (v5e/v6e): trivial shard axis of 1 — no phantom
    # blocks, no extra mask work, no wasted output slab.
    return _partial_sums_call(x2, y2, w2, tile_rows, 1,
                              (pltpu.ARBITRARY, pltpu.ARBITRARY))


def weighted_mae_loss(inputs, targets, weight=1.0):
    """mean(weight * |inputs - targets|), matching the PyTorch module."""
    n = inputs.size

    is_tensor_weight = hasattr(weight, "ndim") and getattr(weight, "ndim", 0) > 0
    if is_tensor_weight and tuple(weight.shape) != tuple(inputs.shape):
        if weight.size == n:
            weight = weight.reshape(inputs.shape)         # no-copy relabel
        else:
            # TODO(synk): low-rank broadcastable weights are still materialized
            # here; an in-kernel per-block broadcast would avoid the extra
            # HBM write+read pass.
            weight = jnp.broadcast_to(weight, inputs.shape)

    x_slab, x_tail = _split_lane_slab(inputs)
    y_slab, y_tail = _split_lane_slab(targets)
    if is_tensor_weight:
        w_slab, w_tail = _split_lane_slab(weight)
    else:
        w_slab, w_tail = None, None

    total = jnp.float32(0.0)
    if x_slab is not None:
        tile_rows = _choose_tile_rows(x_slab.shape[0], inputs.dtype)
        partials = _partial_sums(x_slab, y_slab, w_slab, tile_rows)
        total = total + jnp.sum(partials)
    if x_tail is not None:
        # Ragged tail (< 128 elements): tiny jnp reduction in the wrapper —
        # avoids padding/copying the whole operand through HBM.
        t = jnp.abs(x_tail.astype(jnp.float32) - y_tail.astype(jnp.float32))
        if w_tail is not None:
            t = t * w_tail.astype(jnp.float32)
        total = total + jnp.sum(t)

    loss = total / n
    if not is_tensor_weight:
        if isinstance(weight, (int, float)) and weight == 1.0:
            return loss
        loss = loss * jnp.asarray(weight, dtype=loss.dtype)
    return loss


if __name__ == "__main__":
    key = jax.random.PRNGKey(0)
    k1, k2, k3, k4, k5, k6, k7 = jax.random.split(key, 7)

    # NCHW-shaped example inputs (batch=2, channels=4, spatial=16x16)
    x = jax.random.normal(k1, (2, 4, 16, 16), dtype=jnp.float32)
    t = jax.random.normal(k2, (2, 4, 16, 16), dtype=jnp.float32)
    w_tensor = jax.random.uniform(k3, (2, 4, 16, 16), dtype=jnp.float32)

    # Default path (weight = 1.0) — scalar fast path, 2 streams only.
    loss_default = weighted_mae_loss(x, t)
    jax.block_until_ready(loss_default)
    ref_default = jnp.mean(jnp.abs(x - t))
    assert jnp.allclose(loss_default, ref_default, rtol=1e-5, atol=1e-6)

    # Explicit scalar weight.
    loss_scalar = weighted_mae_loss(x, t, weight=0.5)
    jax.block_until_ready(loss_scalar)
    ref_scalar = jnp.mean(0.5 * jnp.abs(x - t))
    assert jnp.allclose(loss_scalar, ref_scalar, rtol=1e-5, atol=1e-6)

    # Tensor weight (same shape) — 3-stream path, zero-copy reshape.
    loss_tensor = weighted_mae_loss(x, t, weight=w_tensor)
    jax.block_until_ready(loss_tensor)
    ref_tensor = jnp.mean(w_tensor * jnp.abs(x - t))
    assert jnp.allclose(loss_tensor, ref_tensor, rtol=1e-5, atol=1e-6)

    # Partial-block path: exercises the pl.when-gated row mask (and the
    # multi-shard split on multi-core chips).
    xr = jax.random.normal(k4, (2, 4, 16, 20), dtype=jnp.float32)
    tr = jax.random.normal(k5, (2, 4, 16, 20), dtype=jnp.float32)
    loss_ragged = weighted_mae_loss(xr, tr, weight=2.0)
    jax.block_until_ready(loss_ragged)
    ref_ragged = jnp.mean(2.0 * jnp.abs(xr - tr))
    assert jnp.allclose(loss_ragged, ref_ragged, rtol=1e-5, atol=1e-6)

    # Non-128-aligned element count: exercises the jnp tail path (no padding).
    xt = jax.random.normal(k6, (1, 1100), dtype=jnp.float32)
    tt = jax.random.normal(k7, (1, 1100), dtype=jnp.float32)
    loss_tail = weighted_mae_loss(xt, tt, weight=0.25)
    jax.block_until_ready(loss_tail)
    ref_tail = jnp.mean(0.25 * jnp.abs(xt - tt))
    assert jnp.allclose(loss_tail, ref_tail, rtol=1e-5, atol=1e-6)

    print("KERNEL_OK")
</pallas_src>

<mosaic_0001>
module attributes {stable_mosaic.version = 11 : i64} {
  func.func @_wmae_kernel(%arg0: i32, %arg1: i32, %arg2: memref<16x128xf32, #tpu.memory_space<vmem>>, %arg3: memref<16x128xf32, #tpu.memory_space<vmem>>, %arg4: memref<1x8x128xf32, #tpu.memory_space<vmem>>) attributes {dimension_semantics = [#tpu.dimension_semantics<arbitrary>, #tpu.dimension_semantics<arbitrary>], iteration_bounds = array<i64: 1, 1>, scalar_prefetch = 0 : i64, scratch_operands = 0 : i64, tpu.core_type = #tpu.core_type<tc>, window_params = [{transform_indices = @transform_0, window_bounds = array<i64: 16, 128>}, {transform_indices = @transform_1, window_bounds = array<i64: 16, 128>}, {transform_indices = @transform_2, window_bounds = array<i64: 1, 8, 128>}]} {
    %c0_i32 = arith.constant 0 : i32
    %0 = arith.cmpi eq, %arg1, %c0_i32 : i32
    %1 = arith.extui %0 : i1 to i32
    %c0_i32_0 = arith.constant 0 : i32
    %2 = arith.cmpi ne, %1, %c0_i32_0 : i32
    scf.if %2 {
      %cst_10 = arith.constant 0.000000e+00 : f32
      %13 = vector.broadcast %cst_10 : f32 to vector<1x8x128xf32>
      %c0_11 = arith.constant 0 : index
      %c0_12 = arith.constant 0 : index
      %c0_13 = arith.constant 0 : index
      %14 = vector.load %arg4[%c0_11, %c0_12, %c0_13] : memref<1x8x128xf32, #tpu.memory_space<vmem>>, vector<1x8x128xf32>
      tpu.vector_store %arg4[%c0_11, %c0_12, %c0_13], %13 {strides = array<i32>} : memref<1x8x128xf32, #tpu.memory_space<vmem>>, vector<1x8x128xf32>,
    } else {
    }
    %c0 = arith.constant 0 : index
    %c0_1 = arith.constant 0 : index
    %3 = vector.load %arg2[%c0, %c0_1] : memref<16x128xf32, #tpu.memory_space<vmem>>, vector<16x128xf32>
    %c0_2 = arith.constant 0 : index
    %c0_3 = arith.constant 0 : index
    %4 = vector.load %arg3[%c0_2, %c0_3] : memref<16x128xf32, #tpu.memory_space<vmem>>, vector<16x128xf32>
    %5 = arith.subf %3, %4 : vector<16x128xf32>
    %6 = math.absf %5 : vector<16x128xf32>
    %7 = vector.shape_cast %6 : vector<16x128xf32> to vector<2x8x128xf32>
    %cst = arith.constant dense<0.000000e+00> : vector<8x128xf32>
    %8 = vector.multi_reduction <add>, %7, %cst [0] : vector<2x8x128xf32> to vector<8x128xf32>
    %c0_4 = arith.constant 0 : index
    %c0_5 = arith.constant 0 : index
    %c0_6 = arith.constant 0 : index
    %9 = vector.load %arg4[%c0_4, %c0_5, %c0_6] : memref<1x8x128xf32, #tpu.memory_space<vmem>>, vector<1x8x128xf32>
    %10 = vector.shape_cast %8 : vector<8x128xf32> to vector<1x8x128xf32>
    %11 = arith.addf %9, %10 : vector<1x8x128xf32>
    %c0_7 = arith.constant 0 : index
    %c0_8 = arith.constant 0 : index
    %c0_9 = arith.constant 0 : index
    %12 = vector.load %arg4[%c0_7, %c0_8, %c0_9] : memref<1x8x128xf32, #tpu.memory_space<vmem>>, vector<1x8x128xf32>
    tpu.vector_store %arg4[%c0_7, %c0_8, %c0_9], %11 {strides = array<i32>} : memref<1x8x128xf32, #tpu.memory_space<vmem>>, vector<1x8x128xf32>,
    return
  }
  func.func @transform_0(%arg0: i32, %arg1: i32) -> (i32, i32) {
    %c1_i32 = arith.constant 1 : i32
    %0 = arith.muli %arg0, %c1_i32 : i32
    %1 = arith.addi %0, %arg1 : i32
    %c0_i32 = arith.constant 0 : i32
    %c0_i32_0 = arith.constant 0 : i32
    return %1, %c0_i32 : i32, i32
  }
  func.func @transform_1(%arg0: i32, %arg1: i32) -> (i32, i32) {
    %c1_i32 = arith.constant 1 : i32
    %0 = arith.muli %arg0, %c1_i32 : i32
    %1 = arith.addi %0, %arg1 : i32
    %c0_i32 = arith.constant 0 : i32
    %c0_i32_0 = arith.constant 0 : i32
    return %1, %c0_i32 : i32, i32
  }
  func.func @transform_2(%arg0: i32, %arg1: i32) -> (i32, i32, i32) {
    %c0_i32 = arith.constant 0 : i32
    %c0_i32_0 = arith.constant 0 : i32
    %c0_i32_1 = arith.constant 0 : i32
    return %arg0, %c0_i32, %c0_i32_0 : i32, i32, i32
  }
}

</mosaic_0001>

<llo_original>
// kernel: tpu_custom_call.1
$region0: #{tpu_custom_call.1}
  #allocation0 [shape = 'u32[]', space=smem, size = 0x4, offset = 0x4, fixed_abs, tag = 'smem constant byte address 0x4 - core index']
  #allocation1 [shape = 'u32[144,128]{1,0:T(1,128)}', space=vmem, size = 0x12000, scoped, tag = 'internal scratch']
  %s0 = inlined_call_operand.hbm [shape: f32[16,128], index: 0, kind: input, shape index: {}]
  %s1 = inlined_call_operand.hbm [shape: f32[16,128], index: 1, kind: input, shape index: {}]
  %s2 = inlined_call_operand.hbm [shape: f32[1,8,128], index: 2, kind: output, shape index: {}]
  %s3 = sld [smem:[#allocation0]]
  $region30: #{tpu_custom_call.1} parent=0
    _
  %s5 = ssub.s32 1, %s3
  %s6 = scalar_select 0, %s5, %s3
  $region1: #{tpu_custom_call.1} parent=0
    #allocation2 [shape = 'u8[8192]{0}', space=vmem, size = 0x2000, scoped, tag = 'input window, operand 0, single buffered']
    #allocation3 [shape = 's32[1]{0}', space=sflag, size = 0x4, scoped, tag = 'scoped memory for tpu_custom_call.1']
    #allocation4 [shape = 's32[1]{0}', space=sflag, size = 0x4, scoped, tag = 'scoped memory for tpu_custom_call.1']
    #allocation5 [shape = 'u8[8192]{0}', space=vmem, size = 0x2000, scoped, tag = 'input window, operand 1, single buffered']
    #allocation6 [shape = 's32[1]{0}', space=sflag, size = 0x4, scoped, tag = 'scoped memory for tpu_custom_call.1']
    #allocation7 [shape = 'u8[4096]{0}', space=vmem, size = 0x1000, scoped, tag = 'output window, operand 0, single buffered']
    %7 = vsyncpa [#allocation3], 0
    %8 = vsyncpa [#allocation6], 0
    %9 = vsyncpa [#allocation4], 0
    // Predicated region
    $region2: #{tpu_custom_call.1} parent=1 // pred_check
      _
    $region3: #{tpu_custom_call.1} parent=1 // pred_check_branch
      %11 = sbr.rel (0) target = $region5
    $region4: #{tpu_custom_call.1} parent=1 // pred_region
      %s12 = sadd.s32 0, 0
      %s13 = smul.u32 2, %s12
      %s15 = ssub.s32 256, 256
      %16 = vsyncadd [#allocation3], %s15
      %s17 = smul.addr %s13, 128
      %s18 = scalar_lea.hbm %s0, %s17
      %s19 = sshll.u32 [#allocation2], 4
      %s20 = int_to_ptr.vmem [resolvable:$true] %s19
      %25 = dma.hbm_to_vmem [thread:$0]  %s18, 256, %s20, [#allocation3], 128, 128, 8
    $region5: #{tpu_custom_call.1} parent=1 // pred_fallthru
      _
    // Predicated region
    $region6: #{tpu_custom_call.1} parent=1 // pred_check
      _
    $region7: #{tpu_custom_call.1} parent=1 // pred_check_branch
      %27 = sbr.rel (0) target = $region9
    $region8: #{tpu_custom_call.1} parent=1 // pred_region
      %s28 = sadd.s32 0, 0
      %s29 = smul.u32 2, %s28
      %s31 = ssub.s32 256, 256
      %32 = vsyncadd [#allocation6], %s31
      %s33 = smul.addr %s29, 128
      %s34 = scalar_lea.hbm %s1, %s33
      %s35 = sshll.u32 [#allocation5], 4
      %s36 = int_to_ptr.vmem [resolvable:$true] %s35
      %41 = dma.hbm_to_vmem [thread:$0]  %s34, 256, %s36, [#allocation6], 128, 128, 8
    $region9: #{tpu_custom_call.1} parent=1 // pred_fallthru
      _
    // Predicated region
    $region10: #{tpu_custom_call.1} parent=1 // pred_check
      _
    $region11: #{tpu_custom_call.1} parent=1 // pred_check_branch
      %43 = sbr.rel (0) target = $region13
    $region12: #{tpu_custom_call.1} parent=1 // pred_region
      %44 = dma.done [#allocation3], 256
    $region13: #{tpu_custom_call.1} parent=1 // pred_fallthru
      _
    // Predicated region
    $region14: #{tpu_custom_call.1} parent=1 // pred_check
      _
    $region15: #{tpu_custom_call.1} parent=1 // pred_check_branch
      %46 = sbr.rel (0) target = $region17
    $region16: #{tpu_custom_call.1} parent=1 // pred_region
      %47 = dma.done [#allocation6], 256
    $region17: #{tpu_custom_call.1} parent=1 // pred_fallthru
      _
    %s48 = sadd.s32 0, 0
    %s49 = smul.u32 2, %s48
    %s50 = sadd.s32 0, 0
    %s51 = smul.u32 2, %s50
    %p52 = scmp.eq.s32.totalorder 0, 0
    // Predicated region
    $region18: #{tpu_custom_call.1} parent=1 // pred_check
      %p53 = pneg %p52
    $region19: #{tpu_custom_call.1} parent=1 // pred_check_branch
      %55 = sbr.rel (%p53) target = $region21
    $region20: #{tpu_custom_call.1} parent=1 // pred_region
      %56 = vst [vmem:[#allocation7] sm:$0xff] 0.0
    $region21: #{tpu_custom_call.1} parent=1 // pred_fallthru
      _
    %v57 = vld [vmem:[#allocation2] sm:$0xff]
    %v58 = vld [vmem:[#allocation2 + $0x8] sm:$0xff]
    %v59 = vld [vmem:[#allocation5] sm:$0xff]
    %v60 = vld [vmem:[#allocation5 + $0x8] sm:$0xff]
    %v61 = vsub.f32 %v57, %v59
    %v62 = vsub.f32 %v58, %v60
    %v63 = vand.u32 2147483647, %v61
    %v64 = vand.u32 2147483647, %v62
    %v65 = vadd.f32 %v63, %v64
    %v66 = vld [vmem:[#allocation7] sm:$0xff]
    %v67 = vadd.f32 %v66, %v65
    %68 = vst [vmem:[#allocation7] sm:$0xff] %v67
    // Predicated region
    $region22: #{tpu_custom_call.1} parent=1 // pred_check
      _
    $region23: #{tpu_custom_call.1} parent=1 // pred_check_branch
      %70 = sbr.rel (0) target = $region25
    $region24: #{tpu_custom_call.1} parent=1 // pred_region
      %s72 = ssub.s32 128, 128
      %73 = vsyncadd [#allocation4], %s72
      %s75 = sshll.u32 [#allocation7], 4
      %s76 = int_to_ptr.vmem [resolvable:$true] %s75
      %78 = dma.vmem_to_hbm [thread:$0]  %s76, 128, %s2, [#allocation4]
    $region25: #{tpu_custom_call.1} parent=1 // pred_fallthru
      _
    // Predicated region
    $region26: #{tpu_custom_call.1} parent=1 // pred_check
      _
    $region27: #{tpu_custom_call.1} parent=1 // pred_check_branch
      %80 = sbr.rel (0) target = $region29
    $region28: #{tpu_custom_call.1} parent=1 // pred_region
      %81 = dma.done [#allocation4], 128
    $region29: #{tpu_custom_call.1} parent=1 // pred_fallthru
      _
    %82 = vsyncpa [#allocation3], 1
    %83 = vsyncpa [#allocation6], 1
    %84 = vsyncpa [#allocation4], 1

</llo_original>
